<compile_context>
chip_gen: v7x
topology: tpu7x:2x2x1
jax: 0.10.0
libtpu: 0.0.40
codegen_flags: <defaults>
</compile_context>

<pallas_src>
import functools

import numpy as np
import jax
import jax.numpy as jnp
from jax import lax
from jax.experimental import pallas as pl
from jax.experimental.pallas import tpu as pltpu

EPS = 1e-4
_LANE = 128
_VMEM_LIMIT_BYTES = 48 * 1024 * 1024  # safe on v5e/v6e (128 MiB) and v7x (64 MiB)


def _round_up(v, m):
    return (v + m - 1) // m * m


# ----------------------------------------------------------------------------
# Weight normalization (EDM2 `normalize` + gain/sqrt(fan_in) scaling).
# Computed once, outside the conv/matmul grid (hoisted per perf review).
# ----------------------------------------------------------------------------
def _normalize_weight_kernel(w_ref, o_ref, *, gain, eps, fan_in):
    # w_ref / o_ref : (TR, fan_in); per-row L2 norm over the full fan-in.
    w = w_ref[...].astype(jnp.float32)
    norm = jnp.sqrt(jnp.sum(w * w, axis=1, keepdims=True))       # (TR, 1)
    denom = eps + norm * (1.0 / np.sqrt(fan_in))
    o_ref[...] = (w / denom) * (gain / np.sqrt(fan_in))


def _normalize_weight(w2d, gain, eps):
    """w2d: (O, fan_in) raw weight -> (O, fan_in) normalized+scaled, float32."""
    O, fan_in = w2d.shape
    tr = min(256, _round_up(O, 8))
    O_p = _round_up(O, tr)
    w_p = jnp.pad(w2d, ((0, O_p - O), (0, 0)))
    out = pl.pallas_call(
        functools.partial(_normalize_weight_kernel, gain=float(gain),
                          eps=float(eps), fan_in=int(fan_in)),
        out_shape=jax.ShapeDtypeStruct((O_p, fan_in), jnp.float32),
        grid=(O_p // tr,),
        in_specs=[pl.BlockSpec((tr, fan_in), lambda r: (r, 0))],
        out_specs=pl.BlockSpec((tr, fan_in), lambda r: (r, 0)),
        compiler_params=pltpu.CompilerParams(
            dimension_semantics=("parallel",),
            vmem_limit_bytes=_VMEM_LIMIT_BYTES),
    )(w_p)
    return out[:O]


# ----------------------------------------------------------------------------
# 4-D weight path: out = conv2d(x, normalize(w) * gain/sqrt(fan_in), pad=k//2)
# ----------------------------------------------------------------------------
def _mpconv2d_kernel(x_ref, w_ref, o_ref, acc_ref):
    # x_ref : (1, TH + kh - 1, Wp, Cin_p)   one halo'd row band (one (n, h) tile)
    # w_ref : (kh, kw * Cin_p, Cout_p)      normalized weight, resident in VMEM
    # o_ref : (1, TH, W, Cout_p)
    # acc_ref: VMEM (TH * W, Cout_p) float32 scratch accumulator
    cin = x_ref.shape[-1]
    kh, kwcin, cout = w_ref.shape
    kw = kwcin // cin
    _, th, w_out, _ = o_ref.shape

    acc_ref[...] = jnp.zeros_like(acc_ref)
    for dy in range(kh):
        band = x_ref[0, dy:dy + th, :, :]                       # (TH, Wp, Cin_p)
        # Fold the kw taps into the contraction: one MXU matmul per dy with
        # contraction depth kw*Cin_p.  W is a multiple of 8 in practice, so
        # the reshape below is a free (layout-preserving) merge.
        lhs = jnp.concatenate(
            [band[:, dx:dx + w_out, :] for dx in range(kw)], axis=-1)
        lhs = lhs.reshape(th * w_out, kw * cin)
        acc_ref[...] += jnp.dot(lhs, w_ref[dy],
                                preferred_element_type=jnp.float32)
    o_ref[...] = acc_ref[...].reshape(1, th, w_out, cout).astype(o_ref.dtype)


def mpconv2d(x_nchw, weight_oihw, gain=1.0, eps=EPS, *, block_h=32):
    N, Cin, H, W = x_nchw.shape
    Cout, Cin_w, kh, kw = weight_oihw.shape
    assert Cin == Cin_w
    assert kh == kw and kh % 2 == 1, "EDM2 MPConv uses square odd kernels"
    p = kw // 2                       # torch: padding = (w.shape[-1] // 2,)

    # --- lane-dense channel padding + spatial tiling parameters -------------
    Cin_p = _round_up(Cin, _LANE)
    Cout_p = _round_up(Cout, _LANE)
    th = max(1, min(block_h, H))      # output rows per grid step
    H_t = _round_up(H, th)
    nH = H_t // th
    thb = th + kh - 1                 # halo'd band height
    Wp = W + 2 * p

    # --- weight: normalize once (hoisted), then lay out for the kernel ------
    fan_in = Cin * kh * kw
    w_n = _normalize_weight(weight_oihw.reshape(Cout, fan_in), gain, eps)
    w_n = w_n.reshape(Cout, Cin, kh, kw).astype(x_nchw.dtype)
    w_k = jnp.transpose(w_n, (2, 3, 1, 0))                       # (kh, kw, Cin, Cout)
    w_k = jnp.pad(w_k, ((0, 0), (0, 0), (0, Cin_p - Cin), (0, Cout_p - Cout)))
    w_k = w_k.reshape(kh, kw * Cin_p, Cout_p)

    # --- activations: NCHW -> NHWC, pad channels/H, conv padding ------------
    x_nhwc = jnp.transpose(x_nchw, (0, 2, 3, 1))
    x_nhwc = jnp.pad(x_nhwc, ((0, 0), (0, H_t - H), (0, 0), (0, Cin_p - Cin)))
    x_pad = jnp.pad(x_nhwc, ((0, 0), (p, p), (p, p), (0, 0)))    # (N, H_t+2p, Wp, Cin_p)

    # Overlapping row bands (halo = kh-1 rows) so every grid step is a plain
    # Blocked window: band i covers padded rows [i*th, i*th + thb).
    x_bands = jnp.stack([x_pad[:, i * th:i * th + thb] for i in range(nH)],
                        axis=1)
    x_bands = x_bands.reshape(N * nH, thb, Wp, Cin_p)

    out = pl.pallas_call(
        _mpconv2d_kernel,
        out_shape=jax.ShapeDtypeStruct((N, H_t, W, Cout_p), x_nchw.dtype),
        grid=(N, nH),
        in_specs=[
            pl.BlockSpec((1, thb, Wp, Cin_p),
                         lambda n, h: (n * nH + h, 0, 0, 0)),
            pl.BlockSpec((kh, kw * Cin_p, Cout_p),
                         lambda n, h: (0, 0, 0)),                # resident weight
        ],
        out_specs=pl.BlockSpec((1, th, W, Cout_p),
                               lambda n, h: (n, h, 0, 0)),
        scratch_shapes=[pltpu.VMEM((th * W, Cout_p), jnp.float32)],
        compiler_params=pltpu.CompilerParams(
            dimension_semantics=("parallel", "parallel"),
            vmem_limit_bytes=_VMEM_LIMIT_BYTES),
    )(x_bands, w_k)

    out = out[:, :H, :, :Cout]
    return jnp.transpose(out, (0, 3, 1, 2))                      # back to NCHW


# ----------------------------------------------------------------------------
# 2-D weight path: out = x @ (normalize(w) * gain/sqrt(fan_in)).T
# ----------------------------------------------------------------------------
def _mplinear_kernel(x_ref, w_ref, o_ref, acc_ref):
    # x_ref: (TB, TI)   w_ref: (TO, TI)   o_ref: (TB, TO)   acc_ref: f32 (TB, TO)
    @pl.when(pl.program_id(2) == 0)
    def _():
        acc_ref[...] = jnp.zeros_like(acc_ref)

    # Transpose-free: contract dim 1 of x with dim 1 of w (weight stays (O, I)).
    acc_ref[...] += lax.dot_general(
        x_ref[...], w_ref[...],
        dimension_numbers=(((1,), (1,)), ((), ())),
        preferred_element_type=jnp.float32)

    @pl.when(pl.program_id(2) == pl.num_programs(2) - 1)
    def _():
        o_ref[...] = acc_ref[...].astype(o_ref.dtype)


def mplinear(x, weight_oi, gain=1.0, eps=EPS, *,
             block_b=256, block_o=256, block_i=512):
    B, I = x.shape
    O, I_w = weight_oi.shape
    assert I == I_w

    w_n = _normalize_weight(weight_oi, gain, eps).astype(x.dtype)  # (O, I)

    tb = min(block_b, _round_up(B, 8))
    to = min(block_o, _round_up(O, _LANE))
    ti = min(block_i, _round_up(I, _LANE))
    B_p, O_p, I_p = _round_up(B, tb), _round_up(O, to), _round_up(I, ti)

    x_p = jnp.pad(x, ((0, B_p - B), (0, I_p - I)))
    w_p = jnp.pad(w_n, ((0, O_p - O), (0, I_p - I)))

    out = pl.pallas_call(
        _mplinear_kernel,
        out_shape=jax.ShapeDtypeStruct((B_p, O_p), x.dtype),
        grid=(B_p // tb, O_p // to, I_p // ti),
        in_specs=[pl.BlockSpec((tb, ti), lambda b, o, k: (b, k)),
                  pl.BlockSpec((to, ti), lambda b, o, k: (o, k))],
        out_specs=pl.BlockSpec((tb, to), lambda b, o, k: (b, o)),
        scratch_shapes=[pltpu.VMEM((tb, to), jnp.float32)],
        compiler_params=pltpu.CompilerParams(
            dimension_semantics=("parallel", "parallel", "arbitrary"),
            vmem_limit_bytes=_VMEM_LIMIT_BYTES),
    )(x_p, w_p)
    return out[:B, :O]


def mpconv_forward(x, weight, gain=1.0, *, block_h=32):
    """Matches MPConv.forward (eval mode)."""
    if weight.ndim == 2:
        return mplinear(x, weight, gain)
    assert weight.ndim == 4
    return mpconv2d(x, weight, gain, block_h=block_h)


# ----------------------------------------------------------------------------
# Pure-JAX reference (mirrors the PyTorch code) for a correctness check.
# ----------------------------------------------------------------------------
def _ref_normalize_w(w, gain, eps=EPS):
    w = w.astype(jnp.float32)
    red = tuple(range(1, w.ndim))
    norm = jnp.sqrt(jnp.sum(w * w, axis=red, keepdims=True))
    fan_in = int(np.prod(w.shape[1:]))
    denom = eps + norm * (1.0 / np.sqrt(fan_in))
    return (w / denom) * (gain / np.sqrt(fan_in))


def ref_mpconv_forward(x, weight, gain=1.0):
    w = _ref_normalize_w(weight, gain).astype(x.dtype)
    if w.ndim == 2:
        return x @ w.T
    p = w.shape[-1] // 2
    return lax.conv_general_dilated(
        x, w, window_strides=(1, 1), padding=[(p, p), (p, p)],
        dimension_numbers=("NCHW", "OIHW", "NCHW"))


if __name__ == "__main__":
    key = jax.random.PRNGKey(0)
    k_x, k_w, k_x2, k_w2 = jax.random.split(key, 4)

    # conv case: MPConv(in_channels=4, out_channels=8, kernel=[3, 3])
    N, Cin, H, W, Cout, K = 2, 4, 16, 16, 8, 3
    x = jax.random.normal(k_x, (N, Cin, H, W), jnp.float32)
    w_conv = jax.random.normal(k_w, (Cout, Cin, K, K), jnp.float32)

    # block_h=8 -> grid (N=2, H/TH=2): exercises the spatial tiling path.
    out_conv = jax.block_until_ready(mpconv_forward(x, w_conv, gain=1.0, block_h=8))
    ref_conv = ref_mpconv_forward(x, w_conv, gain=1.0)
    np.testing.assert_allclose(np.asarray(out_conv), np.asarray(ref_conv),
                               rtol=1e-4, atol=1e-4)

    # linear case: MPConv(in_channels=32, out_channels=16, kernel=[])
    B, Din, Dout = 2, 32, 16
    x2 = jax.random.normal(k_x2, (B, Din), jnp.float32)
    w_lin = jax.random.normal(k_w2, (Dout, Din), jnp.float32)

    out_lin = jax.block_until_ready(mpconv_forward(x2, w_lin, gain=1.0))
    ref_lin = ref_mpconv_forward(x2, w_lin, gain=1.0)
    np.testing.assert_allclose(np.asarray(out_lin), np.asarray(ref_lin),
                               rtol=1e-4, atol=1e-4)

    print("KERNEL_OK")
</pallas_src>

<mosaic_0001>
module attributes {stable_mosaic.version = 11 : i64} {
  func.func @_normalize_weight_kernel(%arg0: i32, %arg1: memref<8x36xf32, #tpu.memory_space<vmem>>, %arg2: memref<8x36xf32, #tpu.memory_space<vmem>>) attributes {dimension_semantics = [#tpu.dimension_semantics<parallel>], iteration_bounds = array<i64: 1>, scalar_prefetch = 0 : i64, scratch_operands = 0 : i64, tpu.core_type = #tpu.core_type<tc>, window_params = [{transform_indices = @transform_0, window_bounds = array<i64: 8, 36>}, {transform_indices = @transform_1, window_bounds = array<i64: 8, 36>}]} {
    %c0 = arith.constant 0 : index
    %c0_0 = arith.constant 0 : index
    %0 = vector.load %arg1[%c0, %c0_0] : memref<8x36xf32, #tpu.memory_space<vmem>>, vector<8x36xf32>
    %1 = arith.mulf %0, %0 : vector<8x36xf32>
    %cst = arith.constant dense<0.000000e+00> : vector<8xf32>
    %2 = vector.multi_reduction <add>, %1, %cst [1] : vector<8x36xf32> to vector<8xf32>
    %3 = vector.shape_cast %2 : vector<8xf32> to vector<8x1xf32>
    %4 = math.sqrt %3 : vector<8x1xf32>
    %cst_1 = arith.constant 0.166666672 : f32
    %5 = vector.broadcast %cst_1 : f32 to vector<8x1xf32>
    %6 = arith.mulf %4, %5 : vector<8x1xf32>
    %cst_2 = arith.constant 9.99999974E-5 : f32
    %7 = vector.broadcast %cst_2 : f32 to vector<8x1xf32>
    %8 = arith.addf %7, %6 : vector<8x1xf32>
    %9 = vector.broadcast %8 : vector<8x1xf32> to vector<8x36xf32>
    %10 = arith.divf %0, %9 : vector<8x36xf32>
    %cst_3 = arith.constant 0.166666672 : f32
    %11 = vector.broadcast %cst_3 : f32 to vector<8x36xf32>
    %12 = arith.mulf %10, %11 : vector<8x36xf32>
    %c0_4 = arith.constant 0 : index
    %c0_5 = arith.constant 0 : index
    %13 = vector.load %arg2[%c0_4, %c0_5] : memref<8x36xf32, #tpu.memory_space<vmem>>, vector<8x36xf32>
    tpu.vector_store %arg2[%c0_4, %c0_5], %12 {strides = array<i32>} : memref<8x36xf32, #tpu.memory_space<vmem>>, vector<8x36xf32>,
    return
  }
  func.func @transform_0(%arg0: i32) -> (i32, i32) {
    %c0_i32 = arith.constant 0 : i32
    %c0_i32_0 = arith.constant 0 : i32
    return %arg0, %c0_i32 : i32, i32
  }
  func.func @transform_1(%arg0: i32) -> (i32, i32) {
    %c0_i32 = arith.constant 0 : i32
    %c0_i32_0 = arith.constant 0 : i32
    return %arg0, %c0_i32 : i32, i32
  }
}

</mosaic_0001>

<llo_original>
// kernel: tpu_custom_call.1
$region0: #{tpu_custom_call.1}
  #allocation0 [shape = 'u32[]', space=smem, size = 0x4, offset = 0x4, fixed_abs, tag = 'smem constant byte address 0x4 - core index']
  #allocation1 [shape = 'u32[144,128]{1,0:T(1,128)}', space=vmem, size = 0x12000, scoped, tag = 'internal scratch']
  %s0 = inlined_call_operand.hbm [shape: f32[8,36], index: 0, kind: input, shape index: {}]
  %s1 = inlined_call_operand.hbm [shape: f32[8,36], index: 1, kind: output, shape index: {}]
  %s2 = sld [smem:[#allocation0]]
  $region18: #{tpu_custom_call.1} parent=0
    _
  %s4 = ssub.s32 1, %s2
  %s5 = scalar_select 0, %s4, %s2
  $region1: #{tpu_custom_call.1} parent=0
    #allocation2 [shape = 'u8[4096]{0}', space=vmem, size = 0x1000, scoped, tag = 'input window, operand 0, single buffered']
    #allocation3 [shape = 's32[1]{0}', space=sflag, size = 0x4, scoped, tag = 'scoped memory for tpu_custom_call.1']
    #allocation4 [shape = 's32[1]{0}', space=sflag, size = 0x4, scoped, tag = 'scoped memory for tpu_custom_call.1']
    #allocation5 [shape = 'u8[4096]{0}', space=vmem, size = 0x1000, scoped, tag = 'output window, operand 0, single buffered']
    %6 = vsyncpa [#allocation3], 0
    %7 = vsyncpa [#allocation4], 0
    // Predicated region
    $region2: #{tpu_custom_call.1} parent=1 // pred_check
      _
    $region3: #{tpu_custom_call.1} parent=1 // pred_check_branch
      %9 = sbr.rel (0) target = $region5
    $region4: #{tpu_custom_call.1} parent=1 // pred_region
      %s11 = ssub.s32 128, 128
      %12 = vsyncadd [#allocation3], %s11
      %s14 = sshll.u32 [#allocation2], 4
      %s15 = int_to_ptr.vmem [resolvable:$true] %s14
      %17 = dma.hbm_to_vmem [thread:$0]  %s0, 128, %s15, [#allocation3]
    $region5: #{tpu_custom_call.1} parent=1 // pred_fallthru
      _
    // Predicated region
    $region6: #{tpu_custom_call.1} parent=1 // pred_check
      _
    $region7: #{tpu_custom_call.1} parent=1 // pred_check_branch
      %19 = sbr.rel (0) target = $region9
    $region8: #{tpu_custom_call.1} parent=1 // pred_region
      %20 = dma.done [#allocation3], 128
    $region9: #{tpu_custom_call.1} parent=1 // pred_fallthru
      _
    %v21 = vld [vmem:[#allocation2] sm:$0xff]
    %v22 = vmul.f32 %v21, %v21
    %vm23 = vcmask 293888
    %v24 = vsel %vm23, %v22, 0.0
    %25 = vadd.xlane.f32.xlu0 %v24
    %v26 = vpop.xlane.xlu0 %25
    %v27 = vrsqrt.pop %v26
    %v28 = vmul.f32 %v26, %v27
    %vm29 = vcmp.eq.f32.partialorder %v26, inf
    %v30 = vsel %vm29, %v26, %v28
    %vm31 = vcmp.eq.f32.partialorder %v26, 0.0
    %v32 = vand.u32 %v26, 2147483648
    %v33 = vsel %vm31, %v32, %v30
    %v34 = vmul.f32 %v33, 0.16666667
    %v35 = vadd.f32 %v34, 0.0001
    %v36 = vrcp.pop %v35
    %v37 = vmul.f32 %v21, %v36
    %v38 = vmul.f32 %v37, 0.16666667
    %39 = vst.msk [vmem:[#allocation5] sm:$0xff] %vm23, %v38
    // Predicated region
    $region10: #{tpu_custom_call.1} parent=1 // pred_check
      _
    $region11: #{tpu_custom_call.1} parent=1 // pred_check_branch
      %41 = sbr.rel (0) target = $region13
    $region12: #{tpu_custom_call.1} parent=1 // pred_region
      %s43 = ssub.s32 128, 128
      %44 = vsyncadd [#allocation4], %s43
      %s46 = sshll.u32 [#allocation5], 4
      %s47 = int_to_ptr.vmem [resolvable:$true] %s46
      %49 = dma.vmem_to_hbm [thread:$0]  %s47, 128, %s1, [#allocation4]
    $region13: #{tpu_custom_call.1} parent=1 // pred_fallthru
      _
    // Predicated region
    $region14: #{tpu_custom_call.1} parent=1 // pred_check
      _
    $region15: #{tpu_custom_call.1} parent=1 // pred_check_branch
      %51 = sbr.rel (0) target = $region17
    $region16: #{tpu_custom_call.1} parent=1 // pred_region
      %52 = dma.done [#allocation4], 128
    $region17: #{tpu_custom_call.1} parent=1 // pred_fallthru
      _
    %53 = vsyncpa [#allocation3], 1
    %54 = vsyncpa [#allocation4], 1

</llo_original>
